<compile_context>
chip_gen: v5e
topology: v5e:2x2
jax: 0.10.0
libtpu: 0.0.40
codegen_flags: <defaults>
</compile_context>

<pallas_src>
import jax
import jax.numpy as jnp
import numpy as np
from jax.experimental import pallas as pl
from jax.experimental.pallas import tpu as pltpu


# ----------------------------- kernels ------------------------------------- #

def _softmax_rows(scores):
    # Row-wise (last-axis, lane-dim) softmax; divide -> exact reciprocal * mul.
    m = jnp.max(scores, axis=-1, keepdims=True)
    e = jnp.exp(scores - m)
    denom = jnp.sum(e, axis=-1, keepdims=True)
    return e * pl.reciprocal(denom, approx=False)


def _dot_kernel(hid_ref, enc_ref, out_ref):
    hid = hid_ref[0]                                          # (TB, H)
    enc = enc_ref[...]                                        # (S, TB, H) seq-major
    scores_sb = jnp.sum(enc * hid[None, :, :], axis=-1)       # (S, TB)
    scores = jnp.transpose(scores_sb)                         # (TB, S) - tiny 2-D transpose
    out_ref[...] = _softmax_rows(scores)


def _general_kernel(hid_ref, enc_ref, w_ref, b_ref, out_ref):
    # score[b,s] = hid_b . (W enc_{s,b} + bias) = enc_{s,b} . (hid_b @ W) + hid_b . bias
    hid = hid_ref[0]                                          # (TB, H)
    enc = enc_ref[...]                                        # (S, TB, H)
    u = jnp.dot(hid, w_ref[...], preferred_element_type=jnp.float32)     # (TB, H)
    hb = jnp.sum(hid * b_ref[...], axis=-1, keepdims=True)               # (TB, 1)
    scores_sb = jnp.sum(enc * u[None, :, :], axis=-1)                    # (S, TB)
    scores = jnp.transpose(scores_sb) + hb                               # (TB, S)
    out_ref[...] = _softmax_rows(scores)


def _concat_kernel(hid_ref, enc_ref, w1t_ref, w2t_ref, b_ref, v_ref, out_ref):
    hid = hid_ref[0]                                          # (TB, H)
    enc = enc_ref[...]                                        # (S, TB, H)
    s, tb, h = enc.shape
    # hidden part + bias hoisted out of the S-sized work (one small matmul/block)
    part_h = jnp.dot(hid, w1t_ref[...],
                     preferred_element_type=jnp.float32) + b_ref[...]    # (TB, H)
    # one MXU-shaped matmul over the whole block: (S*TB, H) @ (H, H)
    part_e = jnp.dot(enc.reshape(s * tb, h), w2t_ref[...],
                     preferred_element_type=jnp.float32).reshape(s, tb, h)
    energy = jnp.tanh(part_e + part_h[None, :, :])                       # (S, TB, H)
    scores_sb = jnp.sum(energy * v_ref[...], axis=-1)                    # (S, TB)
    scores = jnp.transpose(scores_sb)                                    # (TB, S)
    out_ref[...] = _softmax_rows(scores)


# ----------------------------- wrapper -------------------------------------- #

def _batch_block(B):
    # Second-to-last block dim must equal the full dim or be a multiple of 8.
    # TB == B for small B (single grid step); TB == 8 otherwise, which keeps
    # blocks tile-aligned and gives >=2 "parallel" grid steps for larger B.
    return B if B <= 8 else 8


def attn_forward(method, hidden, encoder_outputs, params):
    """
    hidden:          (1, B, H) float32   (PyTorch layout, NOT transposed here)
    encoder_outputs: (S, B, H) float32   (PyTorch layout, seq-major, NOT transposed here)
    returns:         (B, 1, S) float32   (== torch forward output)
    """
    S, B, H = encoder_outputs.shape
    TB = _batch_block(B)
    grid = (pl.cdiv(B, TB),)

    hid_spec = pl.BlockSpec((1, TB, H), lambda i: (0, i, 0))
    # strided batch slice straight from the seq-major tensor -> no HBM transpose
    enc_spec = pl.BlockSpec((S, TB, H), lambda i: (0, i, 0))
    full2d = lambda shape: pl.BlockSpec(shape, lambda i: (0, 0))
    out_spec = pl.BlockSpec((TB, S), lambda i: (i, 0))          # lane-dense (TB, S) slabs
    out_shape = jax.ShapeDtypeStruct((B, S), jnp.float32)

    # NOTE(v7x): keep 2 * S * TB * H * 4 bytes (double-buffered enc block) well
    # under the ~32 MiB scoped-VMEM default; shrink TB or raise vmem_limit_bytes
    # for very large S*H.
    cparams = pltpu.CompilerParams(dimension_semantics=("parallel",))

    if method == "dot":
        probs = pl.pallas_call(
            _dot_kernel, out_shape=out_shape, grid=grid,
            in_specs=[hid_spec, enc_spec], out_specs=out_spec,
            compiler_params=cparams,
        )(hidden, encoder_outputs)

    elif method == "general":
        W, b = params["attn_w"], params["attn_b"]        # (H, H), (H,)
        probs = pl.pallas_call(
            _general_kernel, out_shape=out_shape, grid=grid,
            in_specs=[hid_spec, enc_spec, full2d((H, H)), full2d((1, H))],
            out_specs=out_spec, compiler_params=cparams,
        )(hidden, encoder_outputs, W, b.reshape(1, H))

    elif method == "concat":
        W, b, v = params["attn_w"], params["attn_b"], params["v"]  # (H, 2H), (H,), (H,)
        W1t = W[:, :H].T                                 # (H, H) multiplies hidden
        W2t = W[:, H:].T                                 # (H, H) multiplies encoder_output
        probs = pl.pallas_call(
            _concat_kernel, out_shape=out_shape, grid=grid,
            in_specs=[hid_spec, enc_spec, full2d((H, H)), full2d((H, H)),
                      full2d((1, H)), full2d((1, H))],
            out_specs=out_spec, compiler_params=cparams,
        )(hidden, encoder_outputs, W1t, W2t, b.reshape(1, H), v.reshape(1, H))

    else:
        raise ValueError(method, "is not an appropriate attention method.")

    return probs[:, None, :]    # (B, 1, S): unsqueeze(1), no data movement


# ----------------------------- reference (plain JAX, torch semantics) ------- #

def attn_reference(method, hidden, encoder_outputs, params):
    if method == "dot":
        energies = jnp.sum(hidden * encoder_outputs, axis=2)             # (S, B)
    elif method == "general":
        W, b = params["attn_w"], params["attn_b"]
        energy = encoder_outputs @ W.T + b                               # (S, B, H)
        energies = jnp.sum(hidden * energy, axis=2)                      # (S, B)
    elif method == "concat":
        W, b, v = params["attn_w"], params["attn_b"], params["v"]
        hid_exp = jnp.broadcast_to(hidden, encoder_outputs.shape)        # (S, B, H)
        cat = jnp.concatenate([hid_exp, encoder_outputs], axis=2)        # (S, B, 2H)
        energy = jnp.tanh(cat @ W.T + b)                                 # (S, B, H)
        energies = jnp.sum(v * energy, axis=2)                           # (S, B)
    energies = energies.T                                                # (B, S)
    return jax.nn.softmax(energies, axis=1)[:, None, :]                  # (B, 1, S)


# ----------------------------- main ----------------------------------------- #

if __name__ == "__main__":
    B, S, H = 2, 8, 32
    key = jax.random.PRNGKey(0)
    k_hid, k_enc, kw1, kb1, kw2, kb2, kv = jax.random.split(key, 7)

    hidden = jax.random.normal(k_hid, (1, B, H), dtype=jnp.float32)
    encoder_outputs = jax.random.normal(k_enc, (S, B, H), dtype=jnp.float32)

    params = {
        # 'general': nn.Linear(H, H)
        "general": {
            "attn_w": 0.1 * jax.random.normal(kw1, (H, H), dtype=jnp.float32),
            "attn_b": 0.1 * jax.random.normal(kb1, (H,), dtype=jnp.float32),
        },
        # 'concat': nn.Linear(2H, H) + v parameter of shape (H,)
        "concat": {
            "attn_w": 0.1 * jax.random.normal(kw2, (H, 2 * H), dtype=jnp.float32),
            "attn_b": 0.1 * jax.random.normal(kb2, (H,), dtype=jnp.float32),
            "v": jax.random.normal(kv, (H,), dtype=jnp.float32),
        },
        "dot": {},
    }

    for method in ["dot", "general", "concat"]:
        out = attn_forward(method, hidden, encoder_outputs, params[method])
        out = jax.block_until_ready(out)
        ref = attn_reference(method, hidden, encoder_outputs, params[method])
        assert out.shape == (B, 1, S), (method, out.shape)
        np.testing.assert_allclose(np.asarray(out), np.asarray(ref),
                                   rtol=1e-5, atol=1e-5)
        # rows sum to 1 (softmax)
        np.testing.assert_allclose(np.asarray(out).sum(-1), 1.0, rtol=1e-5, atol=1e-5)

    print("KERNEL_OK")
</pallas_src>

<mosaic_0001>
module attributes {stable_mosaic.version = 11 : i64} {
  func.func @_dot_kernel(%arg0: i32, %arg1: memref<1x2x32xf32, #tpu.memory_space<vmem>>, %arg2: memref<8x2x32xf32, #tpu.memory_space<vmem>>, %arg3: memref<2x8xf32, #tpu.memory_space<vmem>>) attributes {dimension_semantics = [#tpu.dimension_semantics<parallel>], iteration_bounds = array<i64: 1>, scalar_prefetch = 0 : i64, scratch_operands = 0 : i64, tpu.core_type = #tpu.core_type<tc>, window_params = [{transform_indices = @transform_0, window_bounds = array<i64: 1, 2, 32>}, {transform_indices = @transform_1, window_bounds = array<i64: 8, 2, 32>}, {transform_indices = @transform_2, window_bounds = array<i64: 2, 8>}]} {
    %c0 = arith.constant 0 : index
    %c0_0 = arith.constant 0 : index
    %c0_1 = arith.constant 0 : index
    %0 = vector.load %arg1[%c0, %c0_0, %c0_1] : memref<1x2x32xf32, #tpu.memory_space<vmem>>, vector<1x2x32xf32>
    %1 = vector.shape_cast %0 : vector<1x2x32xf32> to vector<2x32xf32>
    %c0_2 = arith.constant 0 : index
    %c0_3 = arith.constant 0 : index
    %c0_4 = arith.constant 0 : index
    %2 = vector.load %arg2[%c0_2, %c0_3, %c0_4] : memref<8x2x32xf32, #tpu.memory_space<vmem>>, vector<8x2x32xf32>
    %3 = vector.shape_cast %1 : vector<2x32xf32> to vector<1x2x32xf32>
    %4 = vector.broadcast %3 : vector<1x2x32xf32> to vector<8x2x32xf32>
    %5 = arith.mulf %2, %4 : vector<8x2x32xf32>
    %cst = arith.constant dense<0.000000e+00> : vector<8x2xf32>
    %6 = vector.multi_reduction <add>, %5, %cst [2] : vector<8x2x32xf32> to vector<8x2xf32>
    %7 = tpu.transpose %6, [1, 0] : vector<8x2xf32> -> vector<2x8xf32>
    %cst_5 = arith.constant dense<0xFF800000> : vector<2xf32>
    %8 = vector.multi_reduction <maximumf>, %7, %cst_5 [1] : vector<2x8xf32> to vector<2xf32>
    %9 = vector.shape_cast %8 : vector<2xf32> to vector<2x1xf32>
    %10 = vector.broadcast %9 : vector<2x1xf32> to vector<2x8xf32>
    %11 = arith.subf %7, %10 : vector<2x8xf32>
    %12 = math.exp %11 : vector<2x8xf32>
    %cst_6 = arith.constant dense<0.000000e+00> : vector<2xf32>
    %13 = vector.multi_reduction <add>, %12, %cst_6 [1] : vector<2x8xf32> to vector<2xf32>
    %14 = vector.shape_cast %13 : vector<2xf32> to vector<2x1xf32>
    %15 = tpu.reciprocal %14 : vector<2x1xf32> -> vector<2x1xf32>
    %16 = vector.broadcast %15 : vector<2x1xf32> to vector<2x8xf32>
    %17 = arith.mulf %12, %16 : vector<2x8xf32>
    %c0_7 = arith.constant 0 : index
    %c0_8 = arith.constant 0 : index
    %18 = vector.load %arg3[%c0_7, %c0_8] : memref<2x8xf32, #tpu.memory_space<vmem>>, vector<2x8xf32>
    tpu.vector_store %arg3[%c0_7, %c0_8], %17 {strides = array<i32>} : memref<2x8xf32, #tpu.memory_space<vmem>>, vector<2x8xf32>,
    return
  }
  func.func @transform_0(%arg0: i32) -> (i32, i32, i32) {
    %c0_i32 = arith.constant 0 : i32
    %c0_i32_0 = arith.constant 0 : i32
    %c0_i32_1 = arith.constant 0 : i32
    return %c0_i32, %arg0, %c0_i32_0 : i32, i32, i32
  }
  func.func @transform_1(%arg0: i32) -> (i32, i32, i32) {
    %c0_i32 = arith.constant 0 : i32
    %c0_i32_0 = arith.constant 0 : i32
    %c0_i32_1 = arith.constant 0 : i32
    return %c0_i32, %arg0, %c0_i32_0 : i32, i32, i32
  }
  func.func @transform_2(%arg0: i32) -> (i32, i32) {
    %c0_i32 = arith.constant 0 : i32
    %c0_i32_0 = arith.constant 0 : i32
    return %arg0, %c0_i32 : i32, i32
  }
}

</mosaic_0001>

<llo_original>
// kernel: tpu_custom_call.1
$region0: #{tpu_custom_call.1}
  #allocation0 [shape = 'u32[]', space=smem, size = 0x4, offset = 0x4, fixed_abs, tag = 'smem constant byte address 0x4 - core index']
  #allocation1 [shape = 'u32[72,128]{1,0:T(1,128)}', space=vmem, size = 0x9000, scoped, tag = 'internal scratch']
  %s0 = inlined_call_operand.hbm [shape: f32[1,2,32], index: 0, kind: input, shape index: {}]
  %s1 = inlined_call_operand.hbm [shape: f32[8,2,32], index: 1, kind: input, shape index: {}]
  %s2 = inlined_call_operand.hbm [shape: f32[2,8], index: 2, kind: output, shape index: {}]
  %s3 = sld [smem:[#allocation0]]
  $region26: #{tpu_custom_call.1} parent=0
    _
  %s5 = ssub.s32 1, %s3
  %s6 = scalar_select 0, %s5, %s3
  $region1: #{tpu_custom_call.1} parent=0
    #allocation2 [shape = 'u8[1024]{0}', space=vmem, size = 0x400, scoped, tag = 'input window, operand 0, single buffered']
    #allocation3 [shape = 's32[1]{0}', space=sflag, size = 0x4, scoped, tag = 'scoped memory for tpu_custom_call.1']
    #allocation4 [shape = 's32[1]{0}', space=sflag, size = 0x4, scoped, tag = 'scoped memory for tpu_custom_call.1']
    #allocation5 [shape = 'u8[8192]{0}', space=vmem, size = 0x2000, scoped, tag = 'input window, operand 1, single buffered']
    #allocation6 [shape = 's32[1]{0}', space=sflag, size = 0x4, scoped, tag = 'scoped memory for tpu_custom_call.1']
    #allocation7 [shape = 'u8[1024]{0}', space=vmem, size = 0x400, scoped, tag = 'output window, operand 0, single buffered']
    %7 = vsyncpa [#allocation3], 0
    %8 = vsyncpa [#allocation6], 0
    %9 = vsyncpa [#allocation4], 0
    // Predicated region
    $region2: #{tpu_custom_call.1} parent=1 // pred_check
      _
    $region3: #{tpu_custom_call.1} parent=1 // pred_check_branch
      %11 = sbr.rel (0) target = $region5
    $region4: #{tpu_custom_call.1} parent=1 // pred_region
      %13 = vsyncadd [#allocation3], 0
      %s15 = sshll.u32 %s0, 4
      %s16 = int_to_ptr.hbm [resolvable:$true] %s15
      %s17 = sshll.u32 [#allocation2], 4
      %s18 = int_to_ptr.vmem [resolvable:$true] %s17
      %20 = dma.hbm_to_vmem [thread:$0]  %s16, 32, %s18, [#allocation3]
    $region5: #{tpu_custom_call.1} parent=1 // pred_fallthru
      _
    // Predicated region
    $region6: #{tpu_custom_call.1} parent=1 // pred_check
      _
    $region7: #{tpu_custom_call.1} parent=1 // pred_check_branch
      %22 = sbr.rel (0) target = $region9
    $region8: #{tpu_custom_call.1} parent=1 // pred_region
      %24 = vsyncadd [#allocation6], 0
      %s25 = sshll.u32 %s1, 4
      %s26 = int_to_ptr.hbm [resolvable:$true] %s25
      %s27 = sshll.u32 [#allocation5], 4
      %s28 = int_to_ptr.vmem [resolvable:$true] %s27
      %33 = dma.hbm_to_vmem [thread:$0]  %s26, 256, %s28, [#allocation6], 32, 32, 2
    $region9: #{tpu_custom_call.1} parent=1 // pred_fallthru
      _
    // Predicated region
    $region10: #{tpu_custom_call.1} parent=1 // pred_check
      _
    $region11: #{tpu_custom_call.1} parent=1 // pred_check_branch
      %35 = sbr.rel (0) target = $region13
    $region12: #{tpu_custom_call.1} parent=1 // pred_region
      %37 = dma.done [#allocation3], 32
    $region13: #{tpu_custom_call.1} parent=1 // pred_fallthru
      _
    // Predicated region
    $region14: #{tpu_custom_call.1} parent=1 // pred_check
      _
    $region15: #{tpu_custom_call.1} parent=1 // pred_check_branch
      %39 = sbr.rel (0) target = $region17
    $region16: #{tpu_custom_call.1} parent=1 // pred_region
      %41 = dma.done [#allocation6], 256
    $region17: #{tpu_custom_call.1} parent=1 // pred_fallthru
      _
    %v42 = vld [vmem:[#allocation2] sm:$0x3]
    %v43 = vld [vmem:[#allocation5] sm:$0x3]
    %v44 = vld [vmem:[#allocation5 + $0x2] sm:$0x3]
    %v45 = vld [vmem:[#allocation5 + $0x4] sm:$0x3]
    %v46 = vld [vmem:[#allocation5 + $0x6] sm:$0x3]
    %v47 = vld [vmem:[#allocation5 + $0x8] sm:$0x3]
    %v48 = vld [vmem:[#allocation5 + $0xa] sm:$0x3]
    %v49 = vld [vmem:[#allocation5 + $0xc] sm:$0x3]
    %v50 = vld [vmem:[#allocation5 + $0xe] sm:$0x3]
    %v51 = vmul.f32 %v43, %v42
    %v52 = vmul.f32 %v44, %v42
    %v53 = vmul.f32 %v45, %v42
    %v54 = vmul.f32 %v46, %v42
    %v55 = vmul.f32 %v47, %v42
    %v56 = vmul.f32 %v48, %v42
    %v57 = vmul.f32 %v49, %v42
    %v58 = vmul.f32 %v50, %v42
    %vm59 = vcmask 254976
    %v60 = vsel %vm59, %v51, 0.0
    %61 = vadd.xlane.f32.xlu0 %v60
    %v62 = vpop.xlane.xlu0 %61
    %v63 = vsel %vm59, %v52, 0.0
    %64 = vadd.xlane.f32.xlu0 %v63
    %v65 = vpop.xlane.xlu0 %64
    %v66 = vsel %vm59, %v53, 0.0
    %67 = vadd.xlane.f32.xlu0 %v66
    %v68 = vpop.xlane.xlu0 %67
    %v69 = vsel %vm59, %v54, 0.0
    %70 = vadd.xlane.f32.xlu0 %v69
    %v71 = vpop.xlane.xlu0 %70
    %v72 = vsel %vm59, %v55, 0.0
    %73 = vadd.xlane.f32.xlu0 %v72
    %v74 = vpop.xlane.xlu0 %73
    %v75 = vsel %vm59, %v56, 0.0
    %76 = vadd.xlane.f32.xlu0 %v75
    %v77 = vpop.xlane.xlu0 %76
    %v78 = vsel %vm59, %v57, 0.0
    %79 = vadd.xlane.f32.xlu0 %v78
    %v80 = vpop.xlane.xlu0 %79
    %v81 = vsel %vm59, %v58, 0.0
    %82 = vadd.xlane.f32.xlu0 %v81
    %v83 = vpop.xlane.xlu0 %82
    %v92 = vlaneseq
    %v93 = vand.u32 %v92, 127
    %v94 = vperm.slane %v62, %v93
    %v95 = vperm.slane %v65, %v93
    %v96 = vperm.slane %v68, %v93
    %v97 = vperm.slane %v71, %v93
    %v98 = vperm.slane %v74, %v93
    %v99 = vperm.slane %v77, %v93
    %v100 = vperm.slane %v80, %v93
    %v101 = vperm.slane %v83, %v93
    %vm102 = vcmask 1041409
    %v103 = vsel %vm102, %v95, %v94
    %vm104 = vcmask 1042434
    %v105 = vsel %vm104, %v96, %v103
    %vm106 = vcmask 1043459
    %v107 = vsel %vm106, %v97, %v105
    %vm108 = vcmask 1044484
    %v109 = vsel %vm108, %v98, %v107
    %vm110 = vcmask 1045509
    %v111 = vsel %vm110, %v99, %v109
    %vm112 = vcmask 1046534
    %v113 = vsel %vm112, %v100, %v111
    %vm114 = vcmask 1047559
    %v115 = vsel %vm114, %v101, %v113
    %117 = vxpose.xlu0.b32.start [1/16] %v115, 128
    %118 = vxpose.xlu0.b32.cont [2/16] 0.0, 128
    %119 = vxpose.xlu0.b32.cont [3/16] 0.0, 128
    %120 = vxpose.xlu0.b32.cont [4/16] 0.0, 128
    %121 = vxpose.xlu0.b32.cont [5/16] 0.0, 128
    %122 = vxpose.xlu0.b32.cont [6/16] 0.0, 128
    %123 = vxpose.xlu0.b32.cont [7/16] 0.0, 128
    %124 = vxpose.xlu0.b32.cont [8/16] 0.0, 128
    %125 = vxpose.xlu0.b32.cont [9/16] 0.0, 128
    %126 = vxpose.xlu0.b32.cont [10/16] 0.0, 128
    %127 = vxpose.xlu0.b32.cont [11/16] 0.0, 128
    %128 = vxpose.xlu0.b32.cont [12/16] 0.0, 128
    %129 = vxpose.xlu0.b32.cont [13/16] 0.0, 128
    %130 = vxpose.xlu0.b32.cont [14/16] 0.0, 128
    %131 = vxpose.xlu0.b32.cont [15/16] 0.0, 128
    %132 = vxpose.xlu0.b32.end [16/16] 0.0, 128
    %v133 = vpop.trf.xlu0
    %v134 = vpop.trf.xlu0
    %v135 = vpop.trf.xlu0
    %v136 = vpop.trf.xlu0
    %v137 = vpop.trf.xlu0
    %v138 = vpop.trf.xlu0
    %v139 = vpop.trf.xlu0
    %v140 = vpop.trf.xlu0
    %v141 = vpop.trf.xlu0
    %v142 = vpop.trf.xlu0
    %v143 = vpop.trf.xlu0
    %v144 = vpop.trf.xlu0
    %v145 = vpop.trf.xlu0
    %v146 = vpop.trf.xlu0
    %v147 = vpop.trf.xlu0
    %v148 = vpop.trf.xlu0
    %vm149 = vcmask 58368
    %v150 = vsel %vm149, %v133, -inf
    %151 = vmax.xlane.f32.xlu0 %v150
    %v152 = vpop.xlane.xlu0 %151
    %v153 = vsub.f32 %v133, %v152
    %v154 = vmul.f32 %v153, 1.442695
    %v155 = vpow.pop %v154
    %v156 = vsel %vm149, %v155, 0.0
    %157 = vadd.xlane.f32.xlu0 %v156
    %v158 = vpop.xlane.xlu0 %157
    %v159 = vrcp.pop %v158
    %v160 = vmul.f32 %v158, %v159
    %v161 = vsub.f32 1.0, %v160
    %v162 = vmul.f32 %v159, %v161
    %v163 = vadd.f32 %v159, %v162
    %vm164 = vweird.f32 %v158
    %vm165 = vweird.f32 %v159
    %vm166 = vmor %vm164, %vm165
    %v167 = vsel %vm166, %v159, %v163
    %v168 = vand.u32 2147483647, %v158
    %vm169 = vcmp.eq.f32.partialorder %v168, 8.507059e+37
    %v170 = vand.u32 %v158, 2147483648
    %v171 = vor.u32 1.1754944e-38, %v170
    %v172 = vsel %vm169, %v171, %v167
    %v173 = vmul.f32 %v155, %v172
    %174 = vst.msk [vmem:[#allocation7] sm:$0x3] %vm149, %v173
    // Predicated region
    $region18: #{tpu_custom_call.1} parent=1 // pred_check
      _
    $region19: #{tpu_custom_call.1} parent=1 // pred_check_branch
      %176 = sbr.rel (0) target = $region21
    $region20: #{tpu_custom_call.1} parent=1 // pred_region
      %178 = vsyncadd [#allocation4], 0
      %s180 = sshll.u32 [#allocation7], 4
      %s181 = int_to_ptr.vmem [resolvable:$true] %s180
      %s182 = sshll.u32 %s2, 4
      %s183 = int_to_ptr.hbm [resolvable:$true] %s182
      %185 = dma.vmem_to_hbm [thread:$0]  %s181, 32, %s183, [#allocation4]
    $region21: #{tpu_custom_call.1} parent=1 // pred_fallthru
      _
    // Predicated region
    $region22: #{tpu_custom_call.1} parent=1 // pred_check
      _
    $region23: #{tpu_custom_call.1} parent=1 // pred_check_branch
      %187 = sbr.rel (0) target = $region25
    $region24: #{tpu_custom_call.1} parent=1 // pred_region
      %189 = dma.done [#allocation4], 32
    $region25: #{tpu_custom_call.1} parent=1 // pred_fallthru
      _
    %190 = vsyncpa [#allocation3], 1
    %191 = vsyncpa [#allocation6], 1
    %192 = vsyncpa [#allocation4], 1

</llo_original>
